<compile_context>
chip_gen: v7x
topology: tpu7x:2x2x1
jax: 0.10.0
libtpu: 0.0.40
codegen_flags: <defaults>
</compile_context>

<pallas_src>
import functools

import jax
import jax.numpy as jnp
from jax.experimental import pallas as pl
from jax.experimental.pallas import tpu as pltpu


def dlr_loss_kernel(x_ref, yy_ref, out_ref, *, use_mxu_counts):
    # Logits tile; compute in f32 regardless of the storage dtype (the halved
    # HBM read for bf16 inputs is already captured by loading native dtype).
    x = x_ref[...].astype(jnp.float32)
    _, c = x.shape

    yy = yy_ref[...]
    y = yy[:, 0:1]            # (TB, 1) int32
    yt = yy[:, 1:2]           # (TB, 1) int32

    # (1, C) iota broadcast against the (TB, 1) labels: no (TB, C) int32 temp.
    cls = jax.lax.broadcasted_iota(jnp.int32, (1, c), 1)

    # Fused gather x[u, y] - x[u, y_target]: one cross-lane (XLU) sum, exact
    # in f32 (only two nonzero entries per row).
    sel = jnp.where(cls == y, x, 0.0) - jnp.where(cls == yt, x, 0.0)
    num = jnp.sum(sel, axis=1, keepdims=True)                     # (TB, 1) f32

    # Tie counts: for wide rows push the sum-type reductions onto the idle MXU
    # (bf16 0/1 operands accumulated in f32 are exact integers), leaving only
    # the 4 maxes + num on the XLU.  For small C the XLU sum is cheaper.
    if use_mxu_counts:
        ones_k = jnp.ones((c, 128), dtype=jnp.bfloat16)

        def count(eq):
            return jnp.dot(eq.astype(jnp.bfloat16), ones_k,
                           preferred_element_type=jnp.float32)[:, 0:1]
    else:
        def count(eq):
            return jnp.sum(eq.astype(jnp.float32), axis=1, keepdims=True)

    neg_inf = jnp.float32(-jnp.inf)

    # Order statistics sorted[-1], sorted[-3], sorted[-4] with torch.sort
    # duplicate semantics: iteratively take the max, count the ties, mask all
    # tied entries, and track how many ranks have been consumed.
    work = x

    # iteration 0
    m = jnp.max(work, axis=1, keepdims=True)
    eq = work == m
    cnt = count(eq)
    v1 = m
    v3 = jnp.where(cnt >= 3.0, m, neg_inf)
    v4 = jnp.where(cnt >= 4.0, m, neg_inf)
    removed = cnt
    work = jnp.where(eq, neg_inf, work)

    # iterations 1, 2
    for _ in range(2):
        m = jnp.max(work, axis=1, keepdims=True)
        eq = work == m
        cnt = count(eq)
        new_removed = removed + cnt
        v3 = jnp.where((removed < 3.0) & (new_removed >= 3.0), m, v3)
        v4 = jnp.where((removed < 4.0) & (new_removed >= 4.0), m, v4)
        removed = new_removed
        work = jnp.where(eq, neg_inf, work)

    # iteration 3: only rank 4 can still be missing (removed == 3), just a max.
    m = jnp.max(work, axis=1, keepdims=True)
    v4 = jnp.where(removed < 4.0, m, v4)

    denom = v1 - 0.5 * (v3 + v4) + jnp.float32(1e-12)
    out_ref[...] = -num / denom                                   # (TB, 1)


def _round_up(n, m):
    return (n + m - 1) // m * m


def _tile_rows(B, C, itemsize):
    """Batch-tile rows sized from C against a VMEM working-set budget."""
    # Double-buffered input block + ~5 live (TB, C) f32/mask temporaries.
    bytes_per_row = C * (2 * itemsize + 24) + 128
    budget = 16 * 1024 * 1024            # target working set; safe on v7x 64MiB
    tb = max(8, min(int(budget // bytes_per_row), 4096))
    # >= 2 grid tiles whenever B allows it (keeps both v7x TensorCores busy),
    # and never larger than the (8-rounded) batch itself.
    tb = min(tb, _round_up(pl.cdiv(B, 2), 8), _round_up(B, 8))
    tb = max(8, (tb // 8) * 8)
    return tb, bytes_per_row


@functools.partial(jax.jit, static_argnames=("reduction",))
def dlr_loss(x, y, y_target, reduction="mean"):
    """x: (B, C) logits (f32 or bf16); y, y_target: int class indices
    (y_target may be a scalar or a (B,) vector, like the PyTorch module)."""
    B, C = x.shape
    assert C >= 4, "DLR loss requires at least 4 classes"

    y = jnp.asarray(y, dtype=jnp.int32).reshape(-1)
    yt = jnp.broadcast_to(jnp.asarray(y_target, dtype=jnp.int32).reshape(-1), (B,))
    yy = jnp.stack([y, yt], axis=1)                               # (B, 2) int32

    TB, bytes_per_row = _tile_rows(B, C, x.dtype.itemsize)
    G = pl.cdiv(B, TB)                    # ragged last block: no input padding
    vmem_limit = int(min(max(32 * 1024 * 1024, 2 * TB * bytes_per_row),
                         64 * 1024 * 1024))

    kernel = functools.partial(dlr_loss_kernel, use_mxu_counts=(C >= 128))

    per_sample = pl.pallas_call(
        kernel,
        out_shape=jax.ShapeDtypeStruct((B, 1), jnp.float32),
        grid=(G,),
        in_specs=[
            pl.BlockSpec((TB, C), lambda i: (i, 0)),   # logits tile (native dtype)
            pl.BlockSpec((TB, 2), lambda i: (i, 0)),   # packed [y, y_target]
        ],
        out_specs=pl.BlockSpec((TB, 1), lambda i: (i, 0)),
        compiler_params=pltpu.CompilerParams(
            dimension_semantics=("parallel",),         # shard batch tiles across TCs
            vmem_limit_bytes=vmem_limit,
        ),
    )(x, yy)

    loss = per_sample[:, 0]
    if reduction == "mean":
        return jnp.mean(loss)
    elif reduction == "none":
        return loss
    else:
        raise ValueError("Unknown reduction type.")


def dlr_loss_ref(x, y, y_target):
    # Pure-JAX per-sample reference mirroring the PyTorch forward exactly.
    xs = jnp.sort(x, axis=1)
    u = jnp.arange(x.shape[0])
    yt = jnp.broadcast_to(jnp.asarray(y_target).reshape(-1), (x.shape[0],))
    num = x[u, y] - x[u, yt]
    den = xs[:, -1] - 0.5 * (xs[:, -3] + xs[:, -4]) + 1e-12
    return -num / den


if __name__ == "__main__":
    key = jax.random.PRNGKey(0)
    ks = jax.random.split(key, 12)

    def check(x, y, yt):
        out = jax.block_until_ready(dlr_loss(x, y, yt, reduction="none"))
        ref = dlr_loss_ref(x.astype(jnp.float32), y, yt)
        assert out.shape == ref.shape, (out.shape, ref.shape)
        assert jnp.allclose(out, ref, rtol=1e-5, atol=1e-5), (out, ref)

    # Case 1: small batch, 10 classes, single tile (XLU count path).
    B, C = 8, 10
    x = jax.random.normal(ks[0], (B, C), dtype=jnp.float32)
    y = jax.random.randint(ks[1], (B,), 0, C, dtype=jnp.int32)
    yt = jax.random.randint(ks[2], (B,), 0, C, dtype=jnp.int32)
    check(x, y, yt)
    m_out = jax.block_until_ready(dlr_loss(x, y, yt))             # 'mean' path
    m_ref = jnp.mean(dlr_loss_ref(x, y, yt))
    assert jnp.allclose(m_out, m_ref, rtol=1e-5, atol=1e-5), (m_out, m_ref)

    # Case 2: batch not a tile multiple (13 -> tiles of 8 + ragged 5),
    # with duplicate logits (3-way tied max and a fully tied row).
    B2, C2 = 13, 7
    x2 = jax.random.normal(ks[3], (B2, C2), dtype=jnp.float32)
    x2 = x2.at[0, :3].set(2.5)
    x2 = x2.at[5, :].set(0.0)
    y2 = jax.random.randint(ks[4], (B2,), 0, C2, dtype=jnp.int32)
    yt2 = jax.random.randint(ks[5], (B2,), 0, C2, dtype=jnp.int32)
    check(x2, y2, yt2)

    # Case 3: wide rows (C >= 128 -> MXU count path), 2 ragged tiles, ties.
    B3, C3 = 200, 512
    x3 = jax.random.normal(ks[6], (B3, C3), dtype=jnp.float32)
    x3 = x3.at[0, :3].set(4.0)
    x3 = x3.at[7, :].set(1.0)
    y3 = jax.random.randint(ks[7], (B3,), 0, C3, dtype=jnp.int32)
    yt3 = jax.random.randint(ks[8], (B3,), 0, C3, dtype=jnp.int32)
    check(x3, y3, yt3)

    # Case 4: bf16 logits (halved HBM read; f32 compute in-kernel).
    B4, C4 = 64, 256
    x4 = jax.random.normal(ks[9], (B4, C4), dtype=jnp.bfloat16)
    y4 = jax.random.randint(ks[10], (B4,), 0, C4, dtype=jnp.int32)
    yt4 = jax.random.randint(ks[11], (B4,), 0, C4, dtype=jnp.int32)
    check(x4, y4, yt4)

    print("KERNEL_OK")
</pallas_src>

<mosaic_0001>
module attributes {stable_mosaic.version = 11 : i64} {
  func.func @dlr_loss_kernel(%arg0: i32, %arg1: memref<8x10xf32, #tpu.memory_space<vmem>>, %arg2: memref<8x2xi32, #tpu.memory_space<vmem>>, %arg3: memref<8x1xf32, #tpu.memory_space<vmem>>) attributes {dimension_semantics = [#tpu.dimension_semantics<parallel>], iteration_bounds = array<i64: 1>, scalar_prefetch = 0 : i64, scratch_operands = 0 : i64, tpu.core_type = #tpu.core_type<tc>, window_params = [{transform_indices = @transform_0, window_bounds = array<i64: 8, 10>}, {transform_indices = @transform_1, window_bounds = array<i64: 8, 2>}, {transform_indices = @transform_2, window_bounds = array<i64: 8, 1>}]} {
    %c0 = arith.constant 0 : index
    %c0_0 = arith.constant 0 : index
    %0 = vector.load %arg1[%c0, %c0_0] : memref<8x10xf32, #tpu.memory_space<vmem>>, vector<8x10xf32>
    %c0_1 = arith.constant 0 : index
    %c0_2 = arith.constant 0 : index
    %1 = vector.load %arg2[%c0_1, %c0_2] : memref<8x2xi32, #tpu.memory_space<vmem>>, vector<8x2xi32>
    %2 = vector.extract_strided_slice %1 {offsets = [0, 0], sizes = [8, 1], strides = [1, 1]} : vector<8x2xi32> to vector<8x1xi32>
    %3 = vector.extract_strided_slice %1 {offsets = [0, 1], sizes = [8, 1], strides = [1, 1]} : vector<8x2xi32> to vector<8x1xi32>
    %4 = tpu.iota {dimensions = array<i32: 1>} : vector<1x10xi32>
    %5 = vector.broadcast %4 : vector<1x10xi32> to vector<8x10xi32>
    %6 = vector.broadcast %2 : vector<8x1xi32> to vector<8x10xi32>
    %7 = arith.cmpi eq, %5, %6 : vector<8x10xi32>
    %cst = arith.constant 0.000000e+00 : f32
    %8 = vector.broadcast %cst : f32 to vector<8x10xf32>
    %9 = arith.select %7, %0, %8 : vector<8x10xi1>, vector<8x10xf32>
    %10 = vector.broadcast %4 : vector<1x10xi32> to vector<8x10xi32>
    %11 = vector.broadcast %3 : vector<8x1xi32> to vector<8x10xi32>
    %12 = arith.cmpi eq, %10, %11 : vector<8x10xi32>
    %cst_3 = arith.constant 0.000000e+00 : f32
    %13 = vector.broadcast %cst_3 : f32 to vector<8x10xf32>
    %14 = arith.select %12, %0, %13 : vector<8x10xi1>, vector<8x10xf32>
    %15 = arith.subf %9, %14 : vector<8x10xf32>
    %cst_4 = arith.constant dense<0.000000e+00> : vector<8xf32>
    %16 = vector.multi_reduction <add>, %15, %cst_4 [1] : vector<8x10xf32> to vector<8xf32>
    %17 = vector.shape_cast %16 : vector<8xf32> to vector<8x1xf32>
    %cst_5 = arith.constant dense<0xFF800000> : vector<8xf32>
    %18 = vector.multi_reduction <maximumf>, %0, %cst_5 [1] : vector<8x10xf32> to vector<8xf32>
    %19 = vector.shape_cast %18 : vector<8xf32> to vector<8x1xf32>
    %20 = vector.broadcast %19 : vector<8x1xf32> to vector<8x10xf32>
    %21 = arith.cmpf oeq, %0, %20 : vector<8x10xf32>
    %22 = arith.extui %21 : vector<8x10xi1> to vector<8x10xi32>
    %23 = arith.sitofp %22 : vector<8x10xi32> to vector<8x10xf32>
    %cst_6 = arith.constant dense<0.000000e+00> : vector<8xf32>
    %24 = vector.multi_reduction <add>, %23, %cst_6 [1] : vector<8x10xf32> to vector<8xf32>
    %25 = vector.shape_cast %24 : vector<8xf32> to vector<8x1xf32>
    %cst_7 = arith.constant 3.000000e+00 : f32
    %26 = vector.broadcast %cst_7 : f32 to vector<8x1xf32>
    %27 = arith.cmpf oge, %25, %26 : vector<8x1xf32>
    %cst_8 = arith.constant 0xFF800000 : f32
    %28 = vector.broadcast %cst_8 : f32 to vector<8x1xf32>
    %29 = arith.select %27, %19, %28 : vector<8x1xi1>, vector<8x1xf32>
    %cst_9 = arith.constant 4.000000e+00 : f32
    %30 = vector.broadcast %cst_9 : f32 to vector<8x1xf32>
    %31 = arith.cmpf oge, %25, %30 : vector<8x1xf32>
    %cst_10 = arith.constant 0xFF800000 : f32
    %32 = vector.broadcast %cst_10 : f32 to vector<8x1xf32>
    %33 = arith.select %31, %19, %32 : vector<8x1xi1>, vector<8x1xf32>
    %cst_11 = arith.constant 0xFF800000 : f32
    %34 = vector.broadcast %cst_11 : f32 to vector<8x10xf32>
    %35 = arith.select %21, %34, %0 : vector<8x10xi1>, vector<8x10xf32>
    %cst_12 = arith.constant dense<0xFF800000> : vector<8xf32>
    %36 = vector.multi_reduction <maximumf>, %35, %cst_12 [1] : vector<8x10xf32> to vector<8xf32>
    %37 = vector.shape_cast %36 : vector<8xf32> to vector<8x1xf32>
    %38 = vector.broadcast %37 : vector<8x1xf32> to vector<8x10xf32>
    %39 = arith.cmpf oeq, %35, %38 : vector<8x10xf32>
    %40 = arith.extui %39 : vector<8x10xi1> to vector<8x10xi32>
    %41 = arith.sitofp %40 : vector<8x10xi32> to vector<8x10xf32>
    %cst_13 = arith.constant dense<0.000000e+00> : vector<8xf32>
    %42 = vector.multi_reduction <add>, %41, %cst_13 [1] : vector<8x10xf32> to vector<8xf32>
    %43 = vector.shape_cast %42 : vector<8xf32> to vector<8x1xf32>
    %44 = arith.addf %25, %43 : vector<8x1xf32>
    %cst_14 = arith.constant 3.000000e+00 : f32
    %45 = vector.broadcast %cst_14 : f32 to vector<8x1xf32>
    %46 = arith.cmpf olt, %25, %45 : vector<8x1xf32>
    %cst_15 = arith.constant 3.000000e+00 : f32
    %47 = vector.broadcast %cst_15 : f32 to vector<8x1xf32>
    %48 = arith.cmpf oge, %44, %47 : vector<8x1xf32>
    %49 = arith.andi %46, %48 : vector<8x1xi1>
    %50 = arith.select %49, %37, %29 : vector<8x1xi1>, vector<8x1xf32>
    %cst_16 = arith.constant 4.000000e+00 : f32
    %51 = vector.broadcast %cst_16 : f32 to vector<8x1xf32>
    %52 = arith.cmpf olt, %25, %51 : vector<8x1xf32>
    %cst_17 = arith.constant 4.000000e+00 : f32
    %53 = vector.broadcast %cst_17 : f32 to vector<8x1xf32>
    %54 = arith.cmpf oge, %44, %53 : vector<8x1xf32>
    %55 = arith.andi %52, %54 : vector<8x1xi1>
    %56 = arith.select %55, %37, %33 : vector<8x1xi1>, vector<8x1xf32>
    %cst_18 = arith.constant 0xFF800000 : f32
    %57 = vector.broadcast %cst_18 : f32 to vector<8x10xf32>
    %58 = arith.select %39, %57, %35 : vector<8x10xi1>, vector<8x10xf32>
    %cst_19 = arith.constant dense<0xFF800000> : vector<8xf32>
    %59 = vector.multi_reduction <maximumf>, %58, %cst_19 [1] : vector<8x10xf32> to vector<8xf32>
    %60 = vector.shape_cast %59 : vector<8xf32> to vector<8x1xf32>
    %61 = vector.broadcast %60 : vector<8x1xf32> to vector<8x10xf32>
    %62 = arith.cmpf oeq, %58, %61 : vector<8x10xf32>
    %63 = arith.extui %62 : vector<8x10xi1> to vector<8x10xi32>
    %64 = arith.sitofp %63 : vector<8x10xi32> to vector<8x10xf32>
    %cst_20 = arith.constant dense<0.000000e+00> : vector<8xf32>
    %65 = vector.multi_reduction <add>, %64, %cst_20 [1] : vector<8x10xf32> to vector<8xf32>
    %66 = vector.shape_cast %65 : vector<8xf32> to vector<8x1xf32>
    %67 = arith.addf %44, %66 : vector<8x1xf32>
    %cst_21 = arith.constant 3.000000e+00 : f32
    %68 = vector.broadcast %cst_21 : f32 to vector<8x1xf32>
    %69 = arith.cmpf olt, %44, %68 : vector<8x1xf32>
    %cst_22 = arith.constant 3.000000e+00 : f32
    %70 = vector.broadcast %cst_22 : f32 to vector<8x1xf32>
    %71 = arith.cmpf oge, %67, %70 : vector<8x1xf32>
    %72 = arith.andi %69, %71 : vector<8x1xi1>
    %73 = arith.select %72, %60, %50 : vector<8x1xi1>, vector<8x1xf32>
    %cst_23 = arith.constant 4.000000e+00 : f32
    %74 = vector.broadcast %cst_23 : f32 to vector<8x1xf32>
    %75 = arith.cmpf olt, %44, %74 : vector<8x1xf32>
    %cst_24 = arith.constant 4.000000e+00 : f32
    %76 = vector.broadcast %cst_24 : f32 to vector<8x1xf32>
    %77 = arith.cmpf oge, %67, %76 : vector<8x1xf32>
    %78 = arith.andi %75, %77 : vector<8x1xi1>
    %79 = arith.select %78, %60, %56 : vector<8x1xi1>, vector<8x1xf32>
    %cst_25 = arith.constant 0xFF800000 : f32
    %80 = vector.broadcast %cst_25 : f32 to vector<8x10xf32>
    %81 = arith.select %62, %80, %58 : vector<8x10xi1>, vector<8x10xf32>
    %cst_26 = arith.constant dense<0xFF800000> : vector<8xf32>
    %82 = vector.multi_reduction <maximumf>, %81, %cst_26 [1] : vector<8x10xf32> to vector<8xf32>
    %83 = vector.shape_cast %82 : vector<8xf32> to vector<8x1xf32>
    %cst_27 = arith.constant 4.000000e+00 : f32
    %84 = vector.broadcast %cst_27 : f32 to vector<8x1xf32>
    %85 = arith.cmpf olt, %67, %84 : vector<8x1xf32>
    %86 = arith.select %85, %83, %79 : vector<8x1xi1>, vector<8x1xf32>
    %87 = arith.addf %73, %86 : vector<8x1xf32>
    %cst_28 = arith.constant 5.000000e-01 : f32
    %88 = vector.broadcast %cst_28 : f32 to vector<8x1xf32>
    %89 = arith.mulf %88, %87 : vector<8x1xf32>
    %90 = arith.subf %19, %89 : vector<8x1xf32>
    %cst_29 = arith.constant 9.99999996E-13 : f32
    %91 = vector.broadcast %cst_29 : f32 to vector<8x1xf32>
    %92 = arith.addf %90, %91 : vector<8x1xf32>
    %cst_30 = arith.constant 0.000000e+00 : f32
    %93 = vector.broadcast %cst_30 : f32 to vector<8x1xf32>
    %94 = arith.subf %93, %17 : vector<8x1xf32>
    %95 = arith.divf %94, %92 : vector<8x1xf32>
    %c0_31 = arith.constant 0 : index
    %c0_32 = arith.constant 0 : index
    %96 = vector.load %arg3[%c0_31, %c0_32] : memref<8x1xf32, #tpu.memory_space<vmem>>, vector<8x1xf32>
    tpu.vector_store %arg3[%c0_31, %c0_32], %95 {strides = array<i32>} : memref<8x1xf32, #tpu.memory_space<vmem>>, vector<8x1xf32>,
    return
  }
  func.func @transform_0(%arg0: i32) -> (i32, i32) {
    %c0_i32 = arith.constant 0 : i32
    %c0_i32_0 = arith.constant 0 : i32
    return %arg0, %c0_i32 : i32, i32
  }
  func.func @transform_1(%arg0: i32) -> (i32, i32) {
    %c0_i32 = arith.constant 0 : i32
    %c0_i32_0 = arith.constant 0 : i32
    return %arg0, %c0_i32 : i32, i32
  }
  func.func @transform_2(%arg0: i32) -> (i32, i32) {
    %c0_i32 = arith.constant 0 : i32
    %c0_i32_0 = arith.constant 0 : i32
    return %arg0, %c0_i32 : i32, i32
  }
}

</mosaic_0001>

<llo_original>
// kernel: dlr_loss.1
$region0: #{dlr_loss.1}
  #allocation0 [shape = 'u32[]', space=smem, size = 0x4, offset = 0x4, fixed_abs, tag = 'smem constant byte address 0x4 - core index']
  #allocation1 [shape = 'u32[144,128]{1,0:T(1,128)}', space=vmem, size = 0x12000, scoped, tag = 'internal scratch']
  %s0 = inlined_call_operand.vmem [shape: f32[8,10], index: 0, kind: input, shape index: {}]
  %s1 = inlined_call_operand.vmem [shape: s32[8,2], index: 1, kind: input, shape index: {}]
  %s2 = inlined_call_operand.vmem [shape: f32[8,1], index: 2, kind: output, shape index: {}]
  %s3 = sld [smem:[#allocation0]]
  $region18: #{dlr_loss.1} parent=0
    _
  %s5 = ssub.s32 1, %s3
  %s6 = scalar_select 0, %s5, %s3
  // Predicated region
  $region2: #{dlr_loss.1} parent=0 // pred_check
    _
  $region3: #{dlr_loss.1} parent=0 // pred_check_branch
    %8 = sbr.rel (0) target = $region5
  $region4: #{dlr_loss.1} parent=0 // pred_region
    _
  $region5: #{dlr_loss.1} parent=0 // pred_fallthru
    _
  // Predicated region
  $region6: #{dlr_loss.1} parent=0 // pred_check
    _
  $region7: #{dlr_loss.1} parent=0 // pred_check_branch
    %10 = sbr.rel (0) target = $region9
  $region8: #{dlr_loss.1} parent=0 // pred_region
    _
  $region9: #{dlr_loss.1} parent=0 // pred_fallthru
    _
  %v11 = vld [vmem:[%s0] sm:$0xff]
  %v12 = vld [vmem:[%s1] sm:$0xff]
  %v13 = vlaneseq
  %v14 = vand.u32 %v13, 127
  %15 = vset.pattern.permute.xlu0 0
  %16 = vperm.xlu0 %15, %v12
  %v17 = vpop.permute.xlu0 %16
  %vm18 = vcmp.eq.s32.totalorder %v14, %v17
  %v19 = vsel %vm18, %v11, 0.0
  %20 = vset.pattern.permute.xlu0 1
  %21 = vperm.xlu0 %20, %v12
  %v22 = vpop.permute.xlu0 %21
  %vm23 = vcmp.eq.s32.totalorder %v14, %v22
  %v24 = vsel %vm23, %v11, 0.0
  %v25 = vsub.f32 %v19, %v24
  %vm26 = vcmask 80896
  %v27 = vsel %vm26, %v25, 0.0
  %28 = vadd.xlane.f32.xlu0 %v27
  %v29 = vpop.xlane.xlu0 %28
  %v30 = vsel %vm26, %v11, -inf
  %31 = vmax.xlane.f32.xlu0 %v30
  %v32 = vpop.xlane.xlu0 %31
  %vm33 = vcmp.eq.f32.partialorder %v11, %v32
  %v34 = vsel %vm33, 1, 0
  %v35 = vcvt.s32.f32 %v34
  %v36 = vsel %vm26, %v35, 0.0
  %37 = vadd.xlane.f32.xlu0 %v36
  %v38 = vpop.xlane.xlu0 %37
  %vm39 = vcmp.ge.f32.partialorder %v38, 3.0
  %v40 = vsel %vm39, %v32, -inf
  %vm41 = vcmp.ge.f32.partialorder %v38, 4.0
  %v42 = vsel %vm41, %v32, -inf
  %v43 = vsel %vm33, -inf, %v11
  %v44 = vsel %vm26, %v43, -inf
  %45 = vmax.xlane.f32.xlu0 %v44
  %v46 = vpop.xlane.xlu0 %45
  %vm47 = vcmp.eq.f32.partialorder %v43, %v46
  %v48 = vsel %vm47, 1, 0
  %v49 = vcvt.s32.f32 %v48
  %v50 = vsel %vm26, %v49, 0.0
  %51 = vadd.xlane.f32.xlu0 %v50
  %v52 = vpop.xlane.xlu0 %51
  %v53 = vadd.f32 %v38, %v52
  %vm54 = vcmp.lt.f32.partialorder %v38, 3.0
  %vm55 = vcmp.ge.f32.partialorder %v53, 3.0
  %vm56 = vmand %vm54, %vm55
  %v57 = vsel %vm56, %v46, %v40
  %vm58 = vcmp.lt.f32.partialorder %v38, 4.0
  %vm59 = vcmp.ge.f32.partialorder %v53, 4.0
  %vm60 = vmand %vm58, %vm59
  %v61 = vsel %vm60, %v46, %v42
  %v62 = vsel %vm47, -inf, %v43
  %v63 = vsel %vm26, %v62, -inf
  %64 = vmax.xlane.f32.xlu0 %v63
  %v65 = vpop.xlane.xlu0 %64
  %vm66 = vcmp.eq.f32.partialorder %v62, %v65
  %v67 = vsel %vm66, 1, 0
  %v68 = vcvt.s32.f32 %v67
  %v69 = vsel %vm26, %v68, 0.0
  %70 = vadd.xlane.f32.xlu0 %v69
  %v71 = vpop.xlane.xlu0 %70
  %v72 = vadd.f32 %v53, %v71
  %vm73 = vcmp.lt.f32.partialorder %v53, 3.0
  %vm74 = vcmp.ge.f32.partialorder %v72, 3.0
  %vm75 = vmand %vm73, %vm74
  %v76 = vsel %vm75, %v65, %v57
  %vm77 = vcmp.lt.f32.partialorder %v53, 4.0
  %vm78 = vcmp.ge.f32.partialorder %v72, 4.0
  %vm79 = vmand %vm77, %vm78
  %v80 = vsel %vm79, %v65, %v61
  %v81 = vsel %vm66, -inf, %v62
  %v82 = vsel %vm26, %v81, -inf
  %83 = vmax.xlane.f32.xlu0 %v82
  %v84 = vpop.xlane.xlu0 %83
  %vm85 = vcmp.lt.f32.partialorder %v72, 4.0
  %v86 = vsel %vm85, %v84, %v80
  %v87 = vadd.f32 %v76, %v86
  %v88 = vmul.f32 %v87, 0.5
  %v89 = vsub.f32 %v32, %v88
  %v90 = vadd.f32 %v89, 1e-12
  %v91 = vsub.f32 0.0, %v29
  %v92 = vrcp.pop %v90
  %v93 = vmul.f32 %v91, %v92
  %vm94 = vcmask 7168
  %95 = vst.msk [vmem:[%s2] sm:$0xff] %vm94, %v93
  // Predicated region
  $region10: #{dlr_loss.1} parent=0 // pred_check
    _
  $region11: #{dlr_loss.1} parent=0 // pred_check_branch
    %97 = sbr.rel (0) target = $region13
  $region12: #{dlr_loss.1} parent=0 // pred_region
    _
  $region13: #{dlr_loss.1} parent=0 // pred_fallthru
    _
  // Predicated region
  $region14: #{dlr_loss.1} parent=0 // pred_check
    _
  $region15: #{dlr_loss.1} parent=0 // pred_check_branch
    %99 = sbr.rel (0) target = $region17
  $region16: #{dlr_loss.1} parent=0 // pred_region
    _
  $region17: #{dlr_loss.1} parent=0 // pred_fallthru
    _

</llo_original>
